<compile_context>
chip_gen: v7x
topology: tpu7x:2x2x1
jax: 0.10.0
libtpu: 0.0.40
codegen_flags: <defaults>
</compile_context>

<pallas_src>
import functools

import jax
import jax.numpy as jnp
from jax import lax
from jax.experimental import pallas as pl
from jax.experimental.pallas import tpu as pltpu

LANE = 128     # vreg lane width (batch axis)
SUBLANE = 8    # f32 sublane granularity (feature axis)


def _round_up(n: int, m: int) -> int:
    return ((n + m - 1) // m) * m


def _mlp_kernel(x_ref, *refs, mxu_dtype=None, approx_recip=False):
    """Fused MLP over one batch tile; activations kept in [F, B_tile] layout.

    refs = (w0, b0, w1, b1, ..., w_{L-1}, b_{L-1}, o_ref)
      w_l : [F_out_p, F_in_p]   (PyTorch layout, zero-padded to sublane multiples)
      b_l : [F_out_p, 1]        (f32)
      x_ref : [F0_p, B_tile]    (batch on the 128-lane axis)
      o_ref : [F_L_p, B_tile]
    """
    o_ref = refs[-1]
    wb = refs[:-1]
    n_layers = len(wb) // 2

    cast = (lambda a: a.astype(mxu_dtype)) if mxu_dtype is not None else (lambda a: a)

    h = cast(x_ref[...])
    for l in range(n_layers):                      # static unroll; 7 tiny layers
        w = cast(wb[2 * l][...])
        b = wb[2 * l + 1][...].astype(jnp.float32)
        # Plain [M,K]x[K,N]: W[F_out,F_in] . h[F_in,B] -> [F_out, B]; no transposes.
        z = lax.dot_general(
            w, h,
            dimension_numbers=(((1,), (0,)), ((), ())),
            preferred_element_type=jnp.float32,
        ) + b                                       # bias column broadcast over lanes
        if l < n_layers - 1:
            # SiLU: exp and reciprocal both ride the EUP slot.
            h = cast(z * pl.reciprocal(1.0 + jnp.exp(-z), approx=approx_recip))
        else:
            o_ref[...] = z.astype(o_ref.dtype)


def up_and_down_forward(t, x, c, weights, biases, *, block_b=2048,
                        mxu_dtype=None, approx_recip=False):
    """Forward pass of UpAndDownNet (nn.Linear path).

    t: [B, d_t], x: [B, d_x], c: [B, d_c] or None.
    weights[l]: [F_out_l, F_in_l] (PyTorch layout), biases[l]: [F_out_l].
    Returns [B, final_output_dim].
    """
    parts = [t, x] if c is None else [t, x, c]
    h_in = jnp.concatenate(parts, axis=-1)          # [B, F0]; F0 is tiny (~8 floats)
    B, F0 = h_in.shape
    out_dim = weights[-1].shape[0]
    n_layers = len(weights)
    dtype = h_in.dtype

    # Feature dims padded only to sublane granularity (8), NOT to 128 lanes.
    dims = [F0] + [w.shape[0] for w in weights]
    dims_p = [_round_up(d, SUBLANE) for d in dims]

    # ---- adaptive batch tiling: tb multiple of 128 (lane-dense), <= block_b,
    # ---- >= 2 grid steps when possible (v7x megacore), minimal pad waste.
    b_min = _round_up(B, LANE)
    n_steps = max(1, -(-b_min // block_b))
    if b_min >= 2 * LANE:
        n_steps = max(n_steps, 2)
    tb = _round_up(-(-b_min // n_steps), LANE)
    b_pad = tb * n_steps
    grid = (n_steps,)

    # Single fused XLA prep op: concat -> transpose -> zero-pad into [F0_p, b_pad].
    x_p = jnp.zeros((dims_p[0], b_pad), dtype).at[:F0, :B].set(h_in.T)

    padded_params = []
    for l, (w, b) in enumerate(zip(weights, biases)):
        fo, fi = w.shape
        w_p = jnp.zeros((dims_p[l + 1], dims_p[l]), w.dtype).at[:fo, :fi].set(w)
        if mxu_dtype is not None:
            w_p = w_p.astype(mxu_dtype)             # narrow MXU operand (v6e/v7x)
        b_p = jnp.zeros((dims_p[l + 1], 1), jnp.float32).at[:fo, 0].set(
            b.astype(jnp.float32))
        padded_params += [w_p, b_p]

    in_specs = [pl.BlockSpec((dims_p[0], tb), lambda i: (0, i))]
    for l in range(n_layers):
        # Weights / biases: grid-invariant block -> fetched once, VMEM-resident.
        in_specs.append(pl.BlockSpec((dims_p[l + 1], dims_p[l]), lambda i: (0, 0)))
        in_specs.append(pl.BlockSpec((dims_p[l + 1], 1), lambda i: (0, 0)))
    out_spec = pl.BlockSpec((dims_p[-1], tb), lambda i: (0, i))

    itemsize = jnp.dtype(dtype).itemsize
    flops = int(2 * b_pad * sum(dims_p[l] * dims_p[l + 1] for l in range(n_layers)))
    transcendentals = int(b_pad * sum(dims_p[1:-1]))     # one exp per hidden unit
    bytes_accessed = int(
        x_p.size * itemsize
        + sum(p.size * jnp.dtype(p.dtype).itemsize for p in padded_params)
        + b_pad * dims_p[-1] * itemsize
    )

    out_p = pl.pallas_call(
        functools.partial(_mlp_kernel, mxu_dtype=mxu_dtype,
                          approx_recip=approx_recip),
        out_shape=jax.ShapeDtypeStruct((dims_p[-1], b_pad), dtype),
        grid_spec=pl.GridSpec(grid=grid, in_specs=in_specs, out_specs=out_spec),
        compiler_params=pltpu.CompilerParams(
            dimension_semantics=("parallel",),
        ),
        cost_estimate=pl.CostEstimate(
            flops=flops,
            transcendentals=transcendentals,
            bytes_accessed=bytes_accessed,
        ),
    )(x_p, *padded_params)

    # Compact slice + transpose back to the PyTorch [B, out_dim] layout (tiny:
    # only out_dim_pad rows of the [F, B] result are read).
    return out_p[:out_dim, :B].T


def _reference(t, x, c, weights, biases):
    parts = [t, x] if c is None else [t, x, c]
    h = jnp.concatenate(parts, axis=-1)
    for l, (w, b) in enumerate(zip(weights, biases)):
        z = h @ w.T + b
        h = z * jax.nn.sigmoid(z) if l < len(weights) - 1 else z
    return h


def _make_params(key, layer_dims):
    keys = jax.random.split(key, 2 * len(layer_dims))
    weights, biases = [], []
    for l, (fi, fo) in enumerate(layer_dims):
        bound = 1.0 / (fi ** 0.5)
        w = jax.random.uniform(keys[2 * l], (fo, fi), jnp.float32,
                               minval=-bound, maxval=bound)
        b = jax.random.uniform(keys[2 * l + 1], (fo,), jnp.float32,
                               minval=-bound, maxval=bound)
        if l == len(layer_dims) - 1:
            # Module multiplies the final layer's params by 0.02.
            w = w * 0.02
            b = b * 0.02
        weights.append(w)
        biases.append(b)
    return weights, biases


if __name__ == "__main__":
    key = jax.random.PRNGKey(0)

    # UpAndDownNet config (non-bayesian, conditional=True, activation=SiLU).
    embed_t, embed_x, embed_c = 1, 4, 3              # t_dim=1, dims_in=4, dims_c=3
    internal_size = 48                               # must be > 4*(1+4+3) = 32
    final_output_dim = embed_x                       # default: dims_in

    d0 = embed_t + embed_x + embed_c                 # 8
    layer_dims = [
        (d0, 2 * d0),                                # 8  -> 16
        (2 * d0, 4 * d0),                            # 16 -> 32
        (4 * d0, internal_size),                     # 32 -> 48
        (internal_size, internal_size),              # 48 -> 48
        (internal_size, internal_size // 2),         # 48 -> 24
        (internal_size // 2, internal_size // 4),    # 24 -> 12
        (internal_size // 4, final_output_dim),      # 12 -> 4
    ]

    k_params, k_t, k_x, k_c = jax.random.split(key, 4)
    weights, biases = _make_params(k_params, layer_dims)

    # --- small-batch check (single grid step) ---
    batch = 4
    t = jax.random.normal(k_t, (batch, embed_t), jnp.float32)
    x = jax.random.normal(k_x, (batch, embed_x), jnp.float32)
    c = jax.random.normal(k_c, (batch, embed_c), jnp.float32)

    out = up_and_down_forward(t, x, c, weights, biases)
    jax.block_until_ready(out)
    ref = _reference(t, x, c, weights, biases)
    assert out.shape == ref.shape, (out.shape, ref.shape)
    assert jnp.allclose(out, ref, atol=1e-5, rtol=1e-5), "mismatch vs reference (B=4)"

    # --- ragged-batch check (>=2 grid steps, padded last tile) ---
    batch2 = 300
    k_t2, k_x2, k_c2 = jax.random.split(jax.random.PRNGKey(1), 3)
    t2 = jax.random.normal(k_t2, (batch2, embed_t), jnp.float32)
    x2 = jax.random.normal(k_x2, (batch2, embed_x), jnp.float32)
    c2 = jax.random.normal(k_c2, (batch2, embed_c), jnp.float32)

    out2 = up_and_down_forward(t2, x2, c2, weights, biases)
    jax.block_until_ready(out2)
    ref2 = _reference(t2, x2, c2, weights, biases)
    assert out2.shape == ref2.shape, (out2.shape, ref2.shape)
    assert jnp.allclose(out2, ref2, atol=1e-5, rtol=1e-5), "mismatch vs reference (B=300)"

    print("KERNEL_OK")
</pallas_src>

<mosaic_0001>
module attributes {stable_mosaic.version = 11 : i64} {
  func.func @_mlp_kernel(%arg0: i32, %arg1: memref<8x128xf32, #tpu.memory_space<vmem>>, %arg2: memref<16x8xf32, #tpu.memory_space<vmem>>, %arg3: memref<16x1xf32, #tpu.memory_space<vmem>>, %arg4: memref<32x16xf32, #tpu.memory_space<vmem>>, %arg5: memref<32x1xf32, #tpu.memory_space<vmem>>, %arg6: memref<48x32xf32, #tpu.memory_space<vmem>>, %arg7: memref<48x1xf32, #tpu.memory_space<vmem>>, %arg8: memref<48x48xf32, #tpu.memory_space<vmem>>, %arg9: memref<48x1xf32, #tpu.memory_space<vmem>>, %arg10: memref<24x48xf32, #tpu.memory_space<vmem>>, %arg11: memref<24x1xf32, #tpu.memory_space<vmem>>, %arg12: memref<16x24xf32, #tpu.memory_space<vmem>>, %arg13: memref<16x1xf32, #tpu.memory_space<vmem>>, %arg14: memref<8x16xf32, #tpu.memory_space<vmem>>, %arg15: memref<8x1xf32, #tpu.memory_space<vmem>>, %arg16: memref<8x128xf32, #tpu.memory_space<vmem>>) attributes {dimension_semantics = [#tpu.dimension_semantics<parallel>], iteration_bounds = array<i64: 1>, scalar_prefetch = 0 : i64, scratch_operands = 0 : i64, tpu.core_type = #tpu.core_type<tc>, window_params = [{transform_indices = @transform_0, window_bounds = array<i64: 8, 128>}, {pipeline_mode = #tpu.pipeline_mode<synchronous>, transform_indices = @transform_1, window_bounds = array<i64: 16, 8>}, {pipeline_mode = #tpu.pipeline_mode<synchronous>, transform_indices = @transform_2, window_bounds = array<i64: 16, 1>}, {pipeline_mode = #tpu.pipeline_mode<synchronous>, transform_indices = @transform_3, window_bounds = array<i64: 32, 16>}, {pipeline_mode = #tpu.pipeline_mode<synchronous>, transform_indices = @transform_4, window_bounds = array<i64: 32, 1>}, {pipeline_mode = #tpu.pipeline_mode<synchronous>, transform_indices = @transform_5, window_bounds = array<i64: 48, 32>}, {pipeline_mode = #tpu.pipeline_mode<synchronous>, transform_indices = @transform_6, window_bounds = array<i64: 48, 1>}, {pipeline_mode = #tpu.pipeline_mode<synchronous>, transform_indices = @transform_7, window_bounds = array<i64: 48, 48>}, {pipeline_mode = #tpu.pipeline_mode<synchronous>, transform_indices = @transform_8, window_bounds = array<i64: 48, 1>}, {pipeline_mode = #tpu.pipeline_mode<synchronous>, transform_indices = @transform_9, window_bounds = array<i64: 24, 48>}, {pipeline_mode = #tpu.pipeline_mode<synchronous>, transform_indices = @transform_10, window_bounds = array<i64: 24, 1>}, {pipeline_mode = #tpu.pipeline_mode<synchronous>, transform_indices = @transform_11, window_bounds = array<i64: 16, 24>}, {pipeline_mode = #tpu.pipeline_mode<synchronous>, transform_indices = @transform_12, window_bounds = array<i64: 16, 1>}, {pipeline_mode = #tpu.pipeline_mode<synchronous>, transform_indices = @transform_13, window_bounds = array<i64: 8, 16>}, {pipeline_mode = #tpu.pipeline_mode<synchronous>, transform_indices = @transform_14, window_bounds = array<i64: 8, 1>}, {transform_indices = @transform_15, window_bounds = array<i64: 8, 128>}]} {
    %c0 = arith.constant 0 : index
    %c0_0 = arith.constant 0 : index
    %0 = vector.load %arg1[%c0, %c0_0] : memref<8x128xf32, #tpu.memory_space<vmem>>, vector<8x128xf32>
    %c0_1 = arith.constant 0 : index
    %c0_2 = arith.constant 0 : index
    %1 = vector.load %arg2[%c0_1, %c0_2] : memref<16x8xf32, #tpu.memory_space<vmem>>, vector<16x8xf32>
    %c0_3 = arith.constant 0 : index
    %c0_4 = arith.constant 0 : index
    %2 = vector.load %arg3[%c0_3, %c0_4] : memref<16x1xf32, #tpu.memory_space<vmem>>, vector<16x1xf32>
    %cst = arith.constant dense<0.000000e+00> : vector<16x128xf32>
    %3 = tpu.matmul %1, %0, %cst {dimension_numbers = #tpu.dot_dimension_numbers<[1], [0], [0], [1], [0, 0, 1, 1], [], []>} : vector<16x8xf32>, vector<8x128xf32>, vector<16x128xf32> -> vector<16x128xf32>
    %4 = vector.broadcast %2 : vector<16x1xf32> to vector<16x128xf32>
    %5 = arith.addf %3, %4 : vector<16x128xf32>
    %cst_5 = arith.constant 0.000000e+00 : f32
    %6 = vector.broadcast %cst_5 : f32 to vector<16x128xf32>
    %7 = arith.subf %6, %5 : vector<16x128xf32>
    %8 = math.exp %7 : vector<16x128xf32>
    %cst_6 = arith.constant 1.000000e+00 : f32
    %9 = vector.broadcast %cst_6 : f32 to vector<16x128xf32>
    %10 = arith.addf %9, %8 : vector<16x128xf32>
    %11 = tpu.reciprocal %10 : vector<16x128xf32> -> vector<16x128xf32>
    %12 = arith.mulf %5, %11 : vector<16x128xf32>
    %c0_7 = arith.constant 0 : index
    %c0_8 = arith.constant 0 : index
    %13 = vector.load %arg4[%c0_7, %c0_8] : memref<32x16xf32, #tpu.memory_space<vmem>>, vector<32x16xf32>
    %c0_9 = arith.constant 0 : index
    %c0_10 = arith.constant 0 : index
    %14 = vector.load %arg5[%c0_9, %c0_10] : memref<32x1xf32, #tpu.memory_space<vmem>>, vector<32x1xf32>
    %cst_11 = arith.constant dense<0.000000e+00> : vector<32x128xf32>
    %15 = tpu.matmul %13, %12, %cst_11 {dimension_numbers = #tpu.dot_dimension_numbers<[1], [0], [0], [1], [0, 0, 1, 1], [], []>} : vector<32x16xf32>, vector<16x128xf32>, vector<32x128xf32> -> vector<32x128xf32>
    %16 = vector.broadcast %14 : vector<32x1xf32> to vector<32x128xf32>
    %17 = arith.addf %15, %16 : vector<32x128xf32>
    %cst_12 = arith.constant 0.000000e+00 : f32
    %18 = vector.broadcast %cst_12 : f32 to vector<32x128xf32>
    %19 = arith.subf %18, %17 : vector<32x128xf32>
    %20 = math.exp %19 : vector<32x128xf32>
    %cst_13 = arith.constant 1.000000e+00 : f32
    %21 = vector.broadcast %cst_13 : f32 to vector<32x128xf32>
    %22 = arith.addf %21, %20 : vector<32x128xf32>
    %23 = tpu.reciprocal %22 : vector<32x128xf32> -> vector<32x128xf32>
    %24 = arith.mulf %17, %23 : vector<32x128xf32>
    %c0_14 = arith.constant 0 : index
    %c0_15 = arith.constant 0 : index
    %25 = vector.load %arg6[%c0_14, %c0_15] : memref<48x32xf32, #tpu.memory_space<vmem>>, vector<48x32xf32>
    %c0_16 = arith.constant 0 : index
    %c0_17 = arith.constant 0 : index
    %26 = vector.load %arg7[%c0_16, %c0_17] : memref<48x1xf32, #tpu.memory_space<vmem>>, vector<48x1xf32>
    %cst_18 = arith.constant dense<0.000000e+00> : vector<48x128xf32>
    %27 = tpu.matmul %25, %24, %cst_18 {dimension_numbers = #tpu.dot_dimension_numbers<[1], [0], [0], [1], [0, 0, 1, 1], [], []>} : vector<48x32xf32>, vector<32x128xf32>, vector<48x128xf32> -> vector<48x128xf32>
    %28 = vector.broadcast %26 : vector<48x1xf32> to vector<48x128xf32>
    %29 = arith.addf %27, %28 : vector<48x128xf32>
    %cst_19 = arith.constant 0.000000e+00 : f32
    %30 = vector.broadcast %cst_19 : f32 to vector<48x128xf32>
    %31 = arith.subf %30, %29 : vector<48x128xf32>
    %32 = math.exp %31 : vector<48x128xf32>
    %cst_20 = arith.constant 1.000000e+00 : f32
    %33 = vector.broadcast %cst_20 : f32 to vector<48x128xf32>
    %34 = arith.addf %33, %32 : vector<48x128xf32>
    %35 = tpu.reciprocal %34 : vector<48x128xf32> -> vector<48x128xf32>
    %36 = arith.mulf %29, %35 : vector<48x128xf32>
    %c0_21 = arith.constant 0 : index
    %c0_22 = arith.constant 0 : index
    %37 = vector.load %arg8[%c0_21, %c0_22] : memref<48x48xf32, #tpu.memory_space<vmem>>, vector<48x48xf32>
    %c0_23 = arith.constant 0 : index
    %c0_24 = arith.constant 0 : index
    %38 = vector.load %arg9[%c0_23, %c0_24] : memref<48x1xf32, #tpu.memory_space<vmem>>, vector<48x1xf32>
    %cst_25 = arith.constant dense<0.000000e+00> : vector<48x128xf32>
    %39 = tpu.matmul %37, %36, %cst_25 {dimension_numbers = #tpu.dot_dimension_numbers<[1], [0], [0], [1], [0, 0, 1, 1], [], []>} : vector<48x48xf32>, vector<48x128xf32>, vector<48x128xf32> -> vector<48x128xf32>
    %40 = vector.broadcast %38 : vector<48x1xf32> to vector<48x128xf32>
    %41 = arith.addf %39, %40 : vector<48x128xf32>
    %cst_26 = arith.constant 0.000000e+00 : f32
    %42 = vector.broadcast %cst_26 : f32 to vector<48x128xf32>
    %43 = arith.subf %42, %41 : vector<48x128xf32>
    %44 = math.exp %43 : vector<48x128xf32>
    %cst_27 = arith.constant 1.000000e+00 : f32
    %45 = vector.broadcast %cst_27 : f32 to vector<48x128xf32>
    %46 = arith.addf %45, %44 : vector<48x128xf32>
    %47 = tpu.reciprocal %46 : vector<48x128xf32> -> vector<48x128xf32>
    %48 = arith.mulf %41, %47 : vector<48x128xf32>
    %c0_28 = arith.constant 0 : index
    %c0_29 = arith.constant 0 : index
    %49 = vector.load %arg10[%c0_28, %c0_29] : memref<24x48xf32, #tpu.memory_space<vmem>>, vector<24x48xf32>
    %c0_30 = arith.constant 0 : index
    %c0_31 = arith.constant 0 : index
    %50 = vector.load %arg11[%c0_30, %c0_31] : memref<24x1xf32, #tpu.memory_space<vmem>>, vector<24x1xf32>
    %cst_32 = arith.constant dense<0.000000e+00> : vector<24x128xf32>
    %51 = tpu.matmul %49, %48, %cst_32 {dimension_numbers = #tpu.dot_dimension_numbers<[1], [0], [0], [1], [0, 0, 1, 1], [], []>} : vector<24x48xf32>, vector<48x128xf32>, vector<24x128xf32> -> vector<24x128xf32>
    %52 = vector.broadcast %50 : vector<24x1xf32> to vector<24x128xf32>
    %53 = arith.addf %51, %52 : vector<24x128xf32>
    %cst_33 = arith.constant 0.000000e+00 : f32
    %54 = vector.broadcast %cst_33 : f32 to vector<24x128xf32>
    %55 = arith.subf %54, %53 : vector<24x128xf32>
    %56 = math.exp %55 : vector<24x128xf32>
    %cst_34 = arith.constant 1.000000e+00 : f32
    %57 = vector.broadcast %cst_34 : f32 to vector<24x128xf32>
    %58 = arith.addf %57, %56 : vector<24x128xf32>
    %59 = tpu.reciprocal %58 : vector<24x128xf32> -> vector<24x128xf32>
    %60 = arith.mulf %53, %59 : vector<24x128xf32>
    %c0_35 = arith.constant 0 : index
    %c0_36 = arith.constant 0 : index
    %61 = vector.load %arg12[%c0_35, %c0_36] : memref<16x24xf32, #tpu.memory_space<vmem>>, vector<16x24xf32>
    %c0_37 = arith.constant 0 : index
    %c0_38 = arith.constant 0 : index
    %62 = vector.load %arg13[%c0_37, %c0_38] : memref<16x1xf32, #tpu.memory_space<vmem>>, vector<16x1xf32>
    %cst_39 = arith.constant dense<0.000000e+00> : vector<16x128xf32>
    %63 = tpu.matmul %61, %60, %cst_39 {dimension_numbers = #tpu.dot_dimension_numbers<[1], [0], [0], [1], [0, 0, 1, 1], [], []>} : vector<16x24xf32>, vector<24x128xf32>, vector<16x128xf32> -> vector<16x128xf32>
    %64 = vector.broadcast %62 : vector<16x1xf32> to vector<16x128xf32>
    %65 = arith.addf %63, %64 : vector<16x128xf32>
    %cst_40 = arith.constant 0.000000e+00 : f32
    %66 = vector.broadcast %cst_40 : f32 to vector<16x128xf32>
    %67 = arith.subf %66, %65 : vector<16x128xf32>
    %68 = math.exp %67 : vector<16x128xf32>
    %cst_41 = arith.constant 1.000000e+00 : f32
    %69 = vector.broadcast %cst_41 : f32 to vector<16x128xf32>
    %70 = arith.addf %69, %68 : vector<16x128xf32>
    %71 = tpu.reciprocal %70 : vector<16x128xf32> -> vector<16x128xf32>
    %72 = arith.mulf %65, %71 : vector<16x128xf32>
    %c0_42 = arith.constant 0 : index
    %c0_43 = arith.constant 0 : index
    %73 = vector.load %arg14[%c0_42, %c0_43] : memref<8x16xf32, #tpu.memory_space<vmem>>, vector<8x16xf32>
    %c0_44 = arith.constant 0 : index
    %c0_45 = arith.constant 0 : index
    %74 = vector.load %arg15[%c0_44, %c0_45] : memref<8x1xf32, #tpu.memory_space<vmem>>, vector<8x1xf32>
    %cst_46 = arith.constant dense<0.000000e+00> : vector<8x128xf32>
    %75 = tpu.matmul %73, %72, %cst_46 {dimension_numbers = #tpu.dot_dimension_numbers<[1], [0], [0], [1], [0, 0, 1, 1], [], []>} : vector<8x16xf32>, vector<16x128xf32>, vector<8x128xf32> -> vector<8x128xf32>
    %76 = vector.broadcast %74 : vector<8x1xf32> to vector<8x128xf32>
    %77 = arith.addf %75, %76 : vector<8x128xf32>
    %c0_47 = arith.constant 0 : index
    %c0_48 = arith.constant 0 : index
    %78 = vector.load %arg16[%c0_47, %c0_48] : memref<8x128xf32, #tpu.memory_space<vmem>>, vector<8x128xf32>
    tpu.vector_store %arg16[%c0_47, %c0_48], %77 {strides = array<i32>} : memref<8x128xf32, #tpu.memory_space<vmem>>, vector<8x128xf32>,
    return
  }
  func.func @transform_0(%arg0: i32) -> (i32, i32) {
    %c0_i32 = arith.constant 0 : i32
    %c0_i32_0 = arith.constant 0 : i32
    return %c0_i32, %arg0 : i32, i32
  }
  func.func @transform_1(%arg0: i32) -> (i32, i32) {
    %c0_i32 = arith.constant 0 : i32
    %c0_i32_0 = arith.constant 0 : i32
    %c0_i32_1 = arith.constant 0 : i32
    return %c0_i32, %c0_i32_0 : i32, i32
  }
  func.func @transform_2(%arg0: i32) -> (i32, i32) {
    %c0_i32 = arith.constant 0 : i32
    %c0_i32_0 = arith.constant 0 : i32
    %c0_i32_1 = arith.constant 0 : i32
    return %c0_i32, %c0_i32_0 : i32, i32
  }
  func.func @transform_3(%arg0: i32) -> (i32, i32) {
    %c0_i32 = arith.constant 0 : i32
    %c0_i32_0 = arith.constant 0 : i32
    %c0_i32_1 = arith.constant 0 : i32
    return %c0_i32, %c0_i32_0 : i32, i32
  }
  func.func @transform_4(%arg0: i32) -> (i32, i32) {
    %c0_i32 = arith.constant 0 : i32
    %c0_i32_0 = arith.constant 0 : i32
    %c0_i32_1 = arith.constant 0 : i32
    return %c0_i32, %c0_i32_0 : i32, i32
  }
  func.func @transform_5(%arg0: i32) -> (i32, i32) {
    %c0_i32 = arith.constant 0 : i32
    %c0_i32_0 = arith.constant 0 : i32
    %c0_i32_1 = arith.constant 0 : i32
    return %c0_i32, %c0_i32_0 : i32, i32
  }
  func.func @transform_6(%arg0: i32) -> (i32, i32) {
    %c0_i32 = arith.constant 0 : i32
    %c0_i32_0 = arith.constant 0 : i32
    %c0_i32_1 = arith.constant 0 : i32
    return %c0_i32, %c0_i32_0 : i32, i32
  }
  func.func @transform_7(%arg0: i32) -> (i32, i32) {
    %c0_i32 = arith.constant 0 : i32
    %c0_i32_0 = arith.constant 0 : i32
    %c0_i32_1 = arith.constant 0 : i32
    return %c0_i32, %c0_i32_0 : i32, i32
  }
  func.func @transform_8(%arg0: i32) -> (i32, i32) {
    %c0_i32 = arith.constant 0 : i32
    %c0_i32_0 = arith.constant 0 : i32
    %c0_i32_1 = arith.constant 0 : i32
    return %c0_i32, %c0_i32_0 : i32, i32
  }
  func.func @transform_9(%arg0: i32) -> (i32, i32) {
    %c0_i32 = arith.constant 0 : i32
    %c0_i32_0 = arith.constant 0 : i32
    %c0_i32_1 = arith.constant 0 : i32
    return %c0_i32, %c0_i32_0 : i32, i32
  }
  func.func @transform_10(%arg0: i32) -> (i32, i32) {
    %c0_i32 = arith.constant 0 : i32
    %c0_i32_0 = arith.constant 0 : i32
    %c0_i32_1 = arith.constant 0 : i32
    return %c0_i32, %c0_i32_0 : i32, i32
  }
  func.func @transform_11(%arg0: i32) -> (i32, i32) {
    %c0_i32 = arith.constant 0 : i32
    %c0_i32_0 = arith.constant 0 : i32
    %c0_i32_1 = arith.constant 0 : i32
    return %c0_i32, %c0_i32_0 : i32, i32
  }
  func.func @transform_12(%arg0: i32) -> (i32, i32) {
    %c0_i32 = arith.constant 0 : i32
    %c0_i32_0 = arith.constant 0 : i32
    %c0_i32_1 = arith.constant 0 : i32
    return %c0_i32, %c0_i32_0 : i32, i32
  }
  func.func @transform_13(%arg0: i32) -> (i32, i32) {
    %c0_i32 = arith.constant 0 : i32
    %c0_i32_0 = arith.constant 0 : i32
    %c0_i32_1 = arith.constant 0 : i32
    return %c0_i32, %c0_i32_0 : i32, i32
  }
  func.func @transform_14(%arg0: i32) -> (i32, i32) {
    %c0_i32 = arith.constant 0 : i32
    %c0_i32_0 = arith.constant 0 : i32
    %c0_i32_1 = arith.constant 0 : i32
    return %c0_i32, %c0_i32_0 : i32, i32
  }
  func.func @transform_15(%arg0: i32) -> (i32, i32) {
    %c0_i32 = arith.constant 0 : i32
    %c0_i32_0 = arith.constant 0 : i32
    return %c0_i32, %arg0 : i32, i32
  }
}

</mosaic_0001>

<llo_original>
// kernel: tpu_custom_call.1
$region0: #{tpu_custom_call.1}
  #allocation0 [shape = 'u32[]', space=smem, size = 0x4, offset = 0x4, fixed_abs, tag = 'smem constant byte address 0x4 - core index']
  #allocation1 [shape = 'u32[144,128]{1,0:T(1,128)}', space=vmem, size = 0x12000, scoped, tag = 'internal scratch']
  %s0 = inlined_call_operand.vmem [shape: f32[8,128], index: 0, kind: input, shape index: {}]
  %s1 = inlined_call_operand.vmem [shape: f32[16,8], index: 1, kind: input, shape index: {}]
  %s2 = inlined_call_operand.vmem [shape: f32[16,1], index: 2, kind: input, shape index: {}]
  %s3 = inlined_call_operand.vmem [shape: f32[32,16], index: 3, kind: input, shape index: {}]
  %s4 = inlined_call_operand.vmem [shape: f32[32,1], index: 4, kind: input, shape index: {}]
  %s5 = inlined_call_operand.vmem [shape: f32[48,32], index: 5, kind: input, shape index: {}]
  %s6 = inlined_call_operand.vmem [shape: f32[48,1], index: 6, kind: input, shape index: {}]
  %s7 = inlined_call_operand.vmem [shape: f32[48,48], index: 7, kind: input, shape index: {}]
  %s8 = inlined_call_operand.vmem [shape: f32[48,1], index: 8, kind: input, shape index: {}]
  %s9 = inlined_call_operand.vmem [shape: f32[24,48], index: 9, kind: input, shape index: {}]
  %s10 = inlined_call_operand.vmem [shape: f32[24,1], index: 10, kind: input, shape index: {}]
  %s11 = inlined_call_operand.vmem [shape: f32[16,24], index: 11, kind: input, shape index: {}]
  %s12 = inlined_call_operand.vmem [shape: f32[16,1], index: 12, kind: input, shape index: {}]
  %s13 = inlined_call_operand.vmem [shape: f32[8,16], index: 13, kind: input, shape index: {}]
  %s14 = inlined_call_operand.vmem [shape: f32[8,1], index: 14, kind: input, shape index: {}]
  %s15 = inlined_call_operand.hbm [shape: f32[8,128], index: 15, kind: output, shape index: {}]
  %s16 = sld [smem:[#allocation0]]
  $region70: #{tpu_custom_call.1} parent=0
    _
  %s18 = ssub.s32 1, %s16
  %s19 = scalar_select 0, %s18, %s16
  $region1: #{tpu_custom_call.1} parent=0
    #allocation2 [shape = 'u8[4096]{0}', space=vmem, size = 0x1000, scoped, tag = 'output window, operand 0, single buffered']
    #allocation3 [shape = 's32[1]{0}', space=sflag, size = 0x4, scoped, tag = 'scoped memory for tpu_custom_call.1']
    %20 = vsyncpa [#allocation3], 0
    // Predicated region
    $region2: #{tpu_custom_call.1} parent=1 // pred_check
      _
    $region3: #{tpu_custom_call.1} parent=1 // pred_check_branch
      %22 = sbr.rel (0) target = $region5
    $region4: #{tpu_custom_call.1} parent=1 // pred_region
      _
    $region5: #{tpu_custom_call.1} parent=1 // pred_fallthru
      _
    // Predicated region
    $region6: #{tpu_custom_call.1} parent=1 // pred_check
      _
    $region7: #{tpu_custom_call.1} parent=1 // pred_check_branch
      %24 = sbr.rel (0) target = $region9
    $region8: #{tpu_custom_call.1} parent=1 // pred_region
      _
    $region9: #{tpu_custom_call.1} parent=1 // pred_fallthru
      _
    // Predicated region
    $region10: #{tpu_custom_call.1} parent=1 // pred_check
      _
    $region11: #{tpu_custom_call.1} parent=1 // pred_check_branch
      %26 = sbr.rel (0) target = $region13
    $region12: #{tpu_custom_call.1} parent=1 // pred_region
      _
    $region13: #{tpu_custom_call.1} parent=1 // pred_fallthru
      _
    // Predicated region
    $region14: #{tpu_custom_call.1} parent=1 // pred_check
      _
    $region15: #{tpu_custom_call.1} parent=1 // pred_check_branch
      %28 = sbr.rel (0) target = $region17
    $region16: #{tpu_custom_call.1} parent=1 // pred_region
      _
    $region17: #{tpu_custom_call.1} parent=1 // pred_fallthru
      _
    // Predicated region
    $region18: #{tpu_custom_call.1} parent=1 // pred_check
      _
    $region19: #{tpu_custom_call.1} parent=1 // pred_check_branch
      %30 = sbr.rel (0) target = $region21
    $region20: #{tpu_custom_call.1} parent=1 // pred_region
      _
    $region21: #{tpu_custom_call.1} parent=1 // pred_fallthru
      _
    // Predicated region
    $region22: #{tpu_custom_call.1} parent=1 // pred_check
      _
    $region23: #{tpu_custom_call.1} parent=1 // pred_check_branch
      %32 = sbr.rel (0) target = $region25
    $region24: #{tpu_custom_call.1} parent=1 // pred_region
      _
    $region25: #{tpu_custom_call.1} parent=1 // pred_fallthru
      _
    // Predicated region
    $region26: #{tpu_custom_call.1} parent=1 // pred_check
      _
    $region27: #{tpu_custom_call.1} parent=1 // pred_check_branch
      %34 = sbr.rel (0) target = $region29
    $region28: #{tpu_custom_call.1} parent=1 // pred_region
      _
    $region29: #{tpu_custom_call.1} parent=1 // pred_fallthru
      _
    // Predicated region
    $region30: #{tpu_custom_call.1} parent=1 // pred_check
      _
    $region31: #{tpu_custom_call.1} parent=1 // pred_check_branch
      %36 = sbr.rel (0) target = $region33
    $region32: #{tpu_custom_call.1} parent=1 // pred_region
      _
    $region33: #{tpu_custom_call.1} parent=1 // pred_fallthru
      _
    // Predicated region
    $region34: #{tpu_custom_call.1} parent=1 // pred_check
      _
    $region35: #{tpu_custom_call.1} parent=1 // pred_check_branch
      %38 = sbr.rel (0) target = $region37
    $region36: #{tpu_custom_call.1} parent=1 // pred_region
      _
    $region37: #{tpu_custom_call.1} parent=1 // pred_fallthru
      _
    // Predicated region
    $region38: #{tpu_custom_call.1} parent=1 // pred_check
      _
    $region39: #{tpu_custom_call.1} parent=1 // pred_check_branch
      %40 = sbr.rel (0) target = $region41
    $region40: #{tpu_custom_call.1} parent=1 // pred_region
      _
    $region41: #{tpu_custom_call.1} parent=1 // pred_fallthru
      _
    // Predicated region
    $region42: #{tpu_custom_call.1} parent=1 // pred_check
      _
    $region43: #{tpu_custom_call.1} parent=1 // pred_check_branch
      %42 = sbr.rel (0) target = $region45
    $region44: #{tpu_custom_call.1} parent=1 // pred_region
      _
    $region45: #{tpu_custom_call.1} parent=1 // pred_fallthru
      _
    // Predicated region
    $region46: #{tpu_custom_call.1} parent=1 // pred_check
      _
    $region47: #{tpu_custom_call.1} parent=1 // pred_check_branch
      %44 = sbr.rel (0) target = $region49
    $region48: #{tpu_custom_call.1} parent=1 // pred_region
      _
    $region49: #{tpu_custom_call.1} parent=1 // pred_fallthru
      _
    // Predicated region
    $region50: #{tpu_custom_call.1} parent=1 // pred_check
      _
    $region51: #{tpu_custom_call.1} parent=1 // pred_check_branch
      %46 = sbr.rel (0) target = $region53
    $region52: #{tpu_custom_call.1} parent=1 // pred_region
      _
    $region53: #{tpu_custom_call.1} parent=1 // pred_fallthru
      _
    // Predicated region
    $region54: #{tpu_custom_call.1} parent=1 // pred_check
      _
    $region55: #{tpu_custom_call.1} parent=1 // pred_check_branch
      %48 = sbr.rel (0) target = $region57
    $region56: #{tpu_custom_call.1} parent=1 // pred_region
      _
    $region57: #{tpu_custom_call.1} parent=1 // pred_fallthru
      _
    // Predicated region
    $region58: #{tpu_custom_call.1} parent=1 // pred_check
      _
    $region59: #{tpu_custom_call.1} parent=1 // pred_check_branch
      %50 = sbr.rel (0) target = $region61
    $region60: #{tpu_custom_call.1} parent=1 // pred_region
      _
    $region61: #{tpu_custom_call.1} parent=1 // pred_fallthru
      _
    %v51 = vld [vmem:[%s0] sm:$0xff]
    %v52 = vld [vmem:[%s1] sm:$0xff]
    %v53 = vld [vmem:[%s1 + $0x8] sm:$0xff]
    %v54 = vld [vmem:[%s2] sm:$0xff]
    %v55 = vld [vmem:[%s2 + $0x8] sm:$0xff]
    %57 = vset.pattern.permute.xlu0 0
    %58 = vperm.xlu0 %57, %v54
    %v59 = vpop.permute.xlu0 %58
    %62 = vset.pattern.permute.xlu0 0
    %63 = vperm.xlu0 %62, %v55
    %v64 = vpop.permute.xlu0 %63
    %vm66 = vcmask 64512
    %v68 = vsel %vm66, %v52, 0
    %v71 = vsel %vm66, %v53, 0
    %73 = vmatprep.subr.mxu0 0.0
    %74 = vmatpush1.msra.mxu0 %v51
    %75 = vmatprep.subr.mxu0 0.0
    %76 = vmatpush1.msra.mxu0 0.0
    %77 = vmatprep.subr.mxu0 0.0
    %78 = vmatpush1.msra.mxu0 0.0
    %79 = vmatprep.subr.mxu0 0.0
    %80 = vmatpush1.msra.mxu0 0.0
    %81 = vmatprep.subr.mxu0 0.0
    %82 = vmatpush1.msra.mxu0 0.0
    %83 = vmatprep.subr.mxu0 0.0
    %84 = vmatpush1.msra.mxu0 0.0
    %85 = vmatprep.subr.mxu0 0.0
    %86 = vmatpush1.msra.mxu0 0.0
    %87 = vmatprep.subr.mxu0 0.0
    %88 = vmatpush1.msra.mxu0 0.0
    %89 = vmatprep.subr.mxu0 0.0
    %90 = vmatpush1.msra.mxu0 0.0
    %91 = vmatprep.subr.mxu0 0.0
    %92 = vmatpush1.msra.mxu0 0.0
    %93 = vmatprep.subr.mxu0 0.0
    %94 = vmatpush1.msra.mxu0 0.0
    %95 = vmatprep.subr.mxu0 0.0
    %96 = vmatpush1.msra.mxu0 0.0
    %97 = vmatprep.subr.mxu0 0.0
    %98 = vmatpush1.msra.mxu0 0.0
    %99 = vmatprep.subr.mxu0 0.0
    %100 = vmatpush1.msra.mxu0 0.0
    %101 = vmatprep.subr.mxu0 0.0
    %102 = vmatpush1.msra.mxu0 0.0
    %103 = vmatprep.subr.mxu0 0.0
    %104 = vmatpush1.msra.mxu0 0.0
    %105 = vmatprep.subr.mxu0 0.0
    %106 = vmatpush1.msra.mxu0 0.0
    %107 = vmatprep.subr.mxu0 0.0
    %108 = vmatpush1.msra.mxu0 0.0
    %109 = vmatprep.subr.mxu0 0.0
    %110 = vmatpush1.msra.mxu0 0.0
    %111 = vmatprep.subr.mxu0 0.0
    %112 = vmatpush1.msra.mxu0 0.0
    %113 = vmatprep.subr.mxu0 0.0
    %114 = vmatpush1.msra.mxu0 0.0
    %115 = vmatprep.subr.mxu0 0.0
    %116 = vmatpush1.msra.mxu0 0.0
    %117 = vmatprep.subr.mxu0 0.0
    %118 = vmatpush1.msra.mxu0 0.0
    %119 = vmatprep.subr.mxu0 0.0
    %120 = vmatpush1.msra.mxu0 0.0
    %121 = vmatprep.subr.mxu0 0.0
    %122 = vmatpush1.msra.mxu0 0.0
    %123 = vmatprep.subr.mxu0 0.0
    %124 = vmatpush1.msra.mxu0 0.0
    %125 = vmatprep.subr.mxu0 0.0
    %126 = vmatpush1.msra.mxu0 0.0
    %127 = vmatprep.subr.mxu0 0.0
    %128 = vmatpush1.msra.mxu0 0.0
    %129 = vmatprep.subr.mxu0 0.0
    %130 = vmatpush1.msra.mxu0 0.0
    %131 = vmatprep.subr.mxu0 0.0
    %132 = vmatpush1.msra.mxu0 0.0
    %133 = vmatprep.subr.mxu0 0.0
    %134 = vmatpush1.msra.mxu0 0.0
    %135 = vmatprep.subr.mxu0 0.0
    %136 = vmatpush1.msra.mxu0 0.0
    %137 = vmatprep.mubr.f32.mxu0 0.0
    %138 = vmatmul.mubr.f32.gmra.mrb[0].mxu0 %v68
    %v139 = vpop.f32.mrb[0].mxu0
    %v140 = vadd.f32 %v59, %v139
    %v141 = vpop.f32.mrb[0].mxu0
    %142 = vmatprep.mubr.f32.mxu0 0.0
    %143 = vmatmul.mubr.f32.gmra.mrb[0].mxu0 %v71
    %v144 = vpop.f32.mrb[0].mxu0
    %v145 = vadd.f32 %v64, %v144
    %v146 = vpop.f32.mrb[0].mxu0
    %147 = vdwg.mxu0
    %v148 = vsub.f32 0.0, %v140
    %v149 = vsub.f32 0.0, %v145
    %v150 = vmul.f32 %v148, 1.442695
    %v151 = vpow.pop %v150
    %v152 = vmul.f32 %v149, 1.442695
    %v153 = vpow.pop %v152
    %v154 = vadd.f32 %v151, 1.0
    %v155 = vadd.f32 %v153, 1.0
    %v156 = vrcp.pop %v154
    %v157 = vrcp.pop %v155
    %v158 = vmul.f32 %v140, %v156
    %v159 = vmul.f32 %v145, %v157
    %v160 = vld [vmem:[%s3] sm:$0xff]
    %v161 = vld [vmem:[%s3 + $0x8] sm:$0xff]
    %v162 = vld [vmem:[%s3 + $0x10] sm:$0xff]
    %v163 = vld [vmem:[%s3 + $0x18] sm:$0xff]
    %v164 = vld [vmem:[%s4] sm:$0xff]
    %v165 = vld [vmem:[%s4 + $0x8] sm:$0xff]
    %v166 = vld [vmem:[%s4 + $0x10] sm:$0xff]
    %v167 = vld [vmem:[%s4 + $0x18] sm:$0xff]
    %169 = vset.pattern.permute.xlu0 0
    %170 = vperm.xlu0 %169, %v164
    %v171 = vpop.permute.xlu0 %170
    %174 = vset.pattern.permute.xlu0 0
    %175 = vperm.xlu0 %174, %v165
    %v176 = vpop.permute.xlu0 %175
    %179 = vset.pattern.permute.xlu0 0
    %180 = vperm.xlu0 %179, %v166
    %v181 = vpop.permute.xlu0 %180
    %184 = vset.pattern.permute.xlu0 0
    %185 = vperm.xlu0 %184, %v167
    %v186 = vpop.permute.xlu0 %185
    %vm188 = vcmask 130048
    %v190 = vsel %vm188, %v160, 0
    %v193 = vsel %vm188, %v161, 0
    %v196 = vsel %vm188, %v162, 0
    %v199 = vsel %vm188, %v163, 0
    %201 = vmatprep.subr.mxu0 0.0
    %202 = vmatpush1.msra.mxu0 %v158
    %203 = vmatprep.subr.mxu0 0.0
    %204 = vmatpush1.msra.mxu0 %v159
    %205 = vmatprep.subr.mxu0 0.0
    %206 = vmatpush1.msra.mxu0 0.0
    %207 = vmatprep.subr.mxu0 0.0
    %208 = vmatpush1.msra.mxu0 0.0
    %209 = vmatprep.subr.mxu0 0.0
    %210 = vmatpush1.msra.mxu0 0.0
    %211 = vmatprep.subr.mxu0 0.0
    %212 = vmatpush1.msra.mxu0 0.0
    %213 = vmatprep.subr.mxu0 0.0
    %214 = vmatpush1.msra.mxu0 0.0
    %215 = vmatprep.subr.mxu0 0.0
    %216 = vmatpush1.msra.mxu0 0.0
    %217 = vmatprep.subr.mxu0 0.0
    %218 = vmatpush1.msra.mxu0 0.0
    %219 = vmatprep.subr.mxu0 0.0
    %220 = vmatpush1.msra.mxu0 0.0
    %221 = vmatprep.subr.mxu0 0.0
    %222 = vmatpush1.msra.mxu0 0.0
    %223 = vmatprep.subr.mxu0 0.0
    %224 = vmatpush1.msra.mxu0 0.0
    %225 = vmatprep.subr.mxu0 0.0
    %226 = vmatpush1.msra.mxu0 0.0
    %227 = vmatprep.subr.mxu0 0.0
    %228 = vmatpush1.msra.mxu0 0.0
    %229 = vmatprep.subr.mxu0 0.0
    %230 = vmatpush1.msra.mxu0 0.0
    %231 = vmatprep.subr.mxu0 0.0
    %232 = vmatpush1.msra.mxu0 0.0
    %233 = vmatprep.subr.mxu0 0.0
    %234 = vmatpush1.msra.mxu0 0.0
    %235 = vmatprep.subr.mxu0 0.0
    %236 = vmatpush1.msra.mxu0 0.0
    %237 = vmatprep.subr.mxu0 0.0
    %238 = vmatpush1.msra.mxu0 0.0
    %239 = vmatprep.subr.mxu0 0.0
    %240 = vmatpush1.msra.mxu0 0.0
    %241 = vmatprep.subr.mxu0 0.0
    %242 = vmatpush1.msra.mxu0 0.0
    %243 = vmatprep.subr.mxu0 0.0
    %244 = vmatpush1.msra.mxu0 0.0
    %245 = vmatprep.subr.mxu0 0.0
    %246 = vmatpush1.msra.mxu0 0.0
    %247 = vmatprep.subr.mxu0 0.0
    %248 = vmatpush1.msra.mxu0 0.0
    %249 = vmatprep.subr.mxu0 0.0
    %250 = vmatpush1.msra.mxu0 0.0
    %251 = vmatprep.subr.mxu0 0.0
    %252 = vmatpush1.msra.mxu0 0.0
    %253 = vmatprep.subr.mxu0 0.0
    %254 = vmatpush1.msra.mxu0 0.0
    %255 = vmatprep.subr.mxu0 0.0
    %256 = vmatpush1.msra.mxu0 0.0
    %257 = vmatprep.subr.mxu0 0.0
    %258 = vmatpush1.msra.mxu0 0.0
    %259 = vmatprep.subr.mxu0 0.0
    %260 = vmatpush1.msra.mxu0 0.0
    %261 = vmatprep.subr.mxu0 0.0
    %262 = vmatpush1.msra.mxu0 0.0
    %263 = vmatprep.subr.mxu0 0.0
    %264 = vmatpush1.msra.mxu0 0.0
    %265 = vmatprep.mubr.f32.mxu0 0.0
    %266 = vmatmul.mubr.f32.gmra.mrb[0].mxu0 %v190
    %v267 = vpop.f32.mrb[0].mxu0
    %v268 = vadd.f32 %v171, %v267
    %v269 = vpop.f32.mrb[0].mxu0
    %270 = vmatprep.mubr.f32.mxu0 0.0
    %271 = vmatmul.mubr.f32.gmra.mrb[0].mxu0 %v193
    %v272 = vpop.f32.mrb[0].mxu0
    %v273 = vadd.f32 %v176, %v272
    %v274 = vpop.f32.mrb[0].mxu0
    %275 = vmatprep.mubr.f32.mxu0 0.0
    %276 = vmatmul.mubr.f32.gmra.mrb[0].mxu0 %v196
    %v277 = vpop.f32.mrb[0].mxu0
    %v278 = vadd.f32 %v181, %v277
    %v279 = vpop.f32.mrb[0].mxu0
    %280 = vmatprep.mubr.f32.mxu0 0.0
    %281 = vmatmul.mubr.f32.gmra.mrb[0].mxu0 %v199
    %v282 = vpop.f32.mrb[0].mxu0
    %v283 = vadd.f32 %v186, %v282
    %v284 = vpop.f32.mrb[0].mxu0
    %285 = vdwg.mxu0
    %v286 = vsub.f32 0.0, %v268
    %v287 = vsub.f32 0.0, %v273
    %v288 = vsub.f32 0.0, %v278
    %v289 = vsub.f32 0.0, %v283
    %v290 = vmul.f32 %v286, 1.442695
    %v291 = vpow.pop %v290
    %v292 = vmul.f32 %v287, 1.442695
    %v293 = vpow.pop %v292
    %v294 = vmul.f32 %v288, 1.442695
    %v295 = vpow.pop %v294
    %v296 = vmul.f32 %v289, 1.442695
    %v297 = vpow.pop %v296
    %v298 = vadd.f32 %v291, 1.0
    %v299 = vadd.f32 %v293, 1.0
    %v300 = vadd.f32 %v295, 1.0
    %v301 = vadd.f32 %v297, 1.0
    %v302 = vrcp.pop %v298
    %v303 = vrcp.pop %v299
    %v304 = vrcp.pop %v300
    %v305 = vrcp.pop %v301
    %v306 = vmul.f32 %v268, %v302
    %v307 = vmul.f32 %v273, %v303
    %v308 = vmul.f32 %v278, %v304
    %v309 = vmul.f32 %v283, %v305
    %v310 = vld [vmem:[%s5] sm:$0xff]
    %v311 = vld [vmem:[%s5 + $0x8] sm:$0xff]
    %v312 = vld [vmem:[%s5 + $0x10] sm:$0xff]
    %v313 = vld [vmem:[%s5 + $0x18] sm:$0xff]
    %v314 = vld [vmem:[%s5 + $0x20] sm:$0xff]
    %v315 = vld [vmem:[%s5 + $0x28] sm:$0xff]
    %v316 = vld [vmem:[%s6] sm:$0xff]
    %v317 = vld [vmem:[%s6 + $0x8] sm:$0xff]
    %v318 = vld [vmem:[%s6 + $0x10] sm:$0xff]
    %v319 = vld [vmem:[%s6 + $0x18] sm:$0xff]
    %v320 = vld [vmem:[%s6 + $0x20] sm:$0xff]
    %v321 = vld [vmem:[%s6 + $0x28] sm:$0xff]
    %323 = vset.pattern.permute.xlu0 0
    %324 = vperm.xlu0 %323, %v316
    %v325 = vpop.permute.xlu0 %324
    %328 = vset.pattern.permute.xlu0 0
    %329 = vperm.xlu0 %328, %v317
    %v330 = vpop.permute.xlu0 %329
    %333 = vset.pattern.permute.xlu0 0
    %334 = vperm.xlu0 %333, %v318
    %v335 = vpop.permute.xlu0 %334
    %338 = vset.pattern.permute.xlu0 0
    %339 = vperm.xlu0 %338, %v319
    %v340 = vpop.permute.xlu0 %339
    %343 = vset.pattern.permute.xlu0 0
    %344 = vperm.xlu0 %343, %v320
    %v345 = vpop.permute.xlu0 %344
    %348 = vset.pattern.permute.xlu0 0
    %349 = vperm.xlu0 %348, %v321
    %v350 = vpop.permute.xlu0 %349
    %vm352 = vcmask 261120
    %v354 = vsel %vm352, %v310, 0
    %v357 = vsel %vm352, %v311, 0
    %v360 = vsel %vm352, %v312, 0
    %v363 = vsel %vm352, %v313, 0
    %v366 = vsel %vm352, %v314, 0
    %v369 = vsel %vm352, %v315, 0
    %371 = vmatprep.subr.mxu0 0.0
    %372 = vmatpush1.msra.mxu0 %v306
    %373 = vmatprep.subr.mxu0 0.0
    %374 = vmatpush1.msra.mxu0 %v307
    %375 = vmatprep.subr.mxu0 0.0
    %376 = vmatpush1.msra.mxu0 %v308
    %377 = vmatprep.subr.mxu0 0.0
    %378 = vmatpush1.msra.mxu0 %v309
    %379 = vmatprep.subr.mxu0 0.0
    %380 = vmatpush1.msra.mxu0 0.0
    %381 = vmatprep.subr.mxu0 0.0
    %382 = vmatpush1.msra.mxu0 0.0
    %383 = vmatprep.subr.mxu0 0.0
    %384 = vmatpush1.msra.mxu0 0.0
    %385 = vmatprep.subr.mxu0 0.0
    %386 = vmatpush1.msra.mxu0 0.0
    %387 = vmatprep.subr.mxu0 0.0
    %388 = vmatpush1.msra.mxu0 0.0
    %389 = vmatprep.subr.mxu0 0.0
    %390 = vmatpush1.msra.mxu0 0.0
    %391 = vmatprep.subr.mxu0 0.0
    %392 = vmatpush1.msra.mxu0 0.0
    %393 = vmatprep.subr.mxu0 0.0
    %394 = vmatpush1.msra.mxu0 0.0
    %395 = vmatprep.subr.mxu0 0.0
    %396 = vmatpush1.msra.mxu0 0.0
    %397 = vmatprep.subr.mxu0 0.0
    %398 = vmatpush1.msra.mxu0 0.0
    %399 = vmatprep.subr.mxu0 0.0
    %400 = vmatpush1.msra.mxu0 0.0
    %401 = vmatprep.subr.mxu0 0.0
    %402 = vmatpush1.msra.mxu0 0.0
    %403 = vmatprep.subr.mxu0 0.0
    %404 = vmatpush1.msra.mxu0 0.0
    %405 = vmatprep.subr.mxu0 0.0
    %406 = vmatpush1.msra.mxu0 0.0
    %407 = vmatprep.subr.mxu0 0.0
    %408 = vmatpush1.msra.mxu0 0.0
    %409 = vmatprep.subr.mxu0 0.0
    %410 = vmatpush1.msra.mxu0 0.0
    %411 = vmatprep.subr.mxu0 0.0
    %412 = vmatpush1.msra.mxu0 0.0
    %413 = vmatprep.subr.mxu0 0.0
    %414 = vmatpush1.msra.mxu0 0.0
    %415 = vmatprep.subr.mxu0 0.0
    %416 = vmatpush1.msra.mxu0 0.0
    %417 = vmatprep.subr.mxu0 0.0
    %418 = vmatpush1.msra.mxu0 0.0
    %419 = vmatprep.subr.mxu0 0.0
    %420 = vmatpush1.msra.mxu0 0.0
    %421 = vmatprep.subr.mxu0 0.0
    %422 = vmatpush1.msra.mxu0 0.0
    %423 = vmatprep.subr.mxu0 0.0
    %424 = vmatpush1.msra.mxu0 0.0
    %425 = vmatprep.subr.mxu0 0.0
    %426 = vmatpush1.msra.mxu0 0.0
    %427 = vmatprep.subr.mxu0 0.0
    %428 = vmatpush1.msra.mxu0 0.0
    %429 = vmatprep.subr.mxu0 0.0
    %430 = vmatpush1.msra.mxu0 0.0
    %431 = vmatprep.subr.mxu0 0.0
    %432 = vmatpush1.msra.mxu0 0.0
    %433 = vmatprep.subr.mxu0 0.0
    %434 = vmatpush1.msra.mxu0 0.0
    %435 = vmatprep.mubr.f32.mxu0 0.0
    %436 = vmatmul.mubr.f32.gmra.mrb[0].mxu0 %v354
    %v437 = vpop.f32.mrb[0].mxu0
    %v438 = vadd.f32 %v325, %v437
    %v439 = vpop.f32.mrb[0].mxu0
    %440 = vmatprep.mubr.f32.mxu0 0.0
    %441 = vmatmul.mubr.f32.gmra.mrb[0].mxu0 %v357
    %v442 = vpop.f32.mrb[0].mxu0
    %v443 = vadd.f32 %v330, %v442
    %v444 = vpop.f32.mrb[0].mxu0
    %445 = vmatprep.mubr.f32.mxu0 0.0
    %446 = vmatmul.mubr.f32.gmra.mrb[0].mxu0 %v360
    %v447 = vpop.f32.mrb[0].mxu0
    %v448 = vadd.f32 %v335, %v447
    %v449 = vpop.f32.mrb[0].mxu0
    %450 = vmatprep.mubr.f32.mxu0 0.0
    %451 = vmatmul.mubr.f32.gmra.mrb[0].mxu0 %v363
    %v452 = vpop.f32.mrb[0].mxu0
    %v453 = vadd.f32 %v340, %v452
    %v454 = vpop.f32.mrb[0].mxu0
    %455 = vmatprep.mubr.f32.mxu0 0.0
    %456 = vmatmul.mubr.f32.gmra.mrb[0].mxu0 %v366
    %v457 = vpop.f32.mrb[0].mxu0
    %v458 = vadd.f32 %v345, %v457
    %v459 = vpop.f32.mrb[0].mxu0
    %460 = vmatprep.mubr.f32.mxu0 0.0
    %461 = vmatmul.mubr.f32.gmra.mrb[0].mxu0 %v369
    %v462 = vpop.f32.mrb[0].mxu0
    %v463 = vadd.f32 %v350, %v462
    %v464 = vpop.f32.mrb[0].mxu0
    %465 = vdwg.mxu0
    %v466 = vsub.f32 0.0, %v438
    %v467 = vsub.f32 0.0, %v443
    %v468 = vsub.f32 0.0, %v448
    %v469 = vsub.f32 0.0, %v453
    %v470 = vsub.f32 0.0, %v458
    %v471 = vsub.f32 0.0, %v463
    %v472 = vmul.f32 %v466, 1.442695
    %v473 = vpow.pop %v472
    %v474 = vmul.f32 %v467, 1.442695
    %v475 = vpow.pop %v474
    %v476 = vmul.f32 %v468, 1.442695
    %v477 = vpow.pop %v476
    %v478 = vmul.f32 %v469, 1.442695
    %v479 = vpow.pop %v478
    %v480 = vmul.f32 %v470, 1.442695
    %v481 = vpow.pop %v480
    %v482 = vmul.f32 %v471, 1.442695
    %v483 = vpow.pop %v482
    %v484 = vadd.f32 %v473, 1.0
    %v485 = vadd.f32 %v475, 1.0
    %v486 = vadd.f32 %v477, 1.0
    %v487 = vadd.f32 %v479, 1.0
    %v488 = vadd.f32 %v481, 1.0
    %v489 = vadd.f32 %v483, 1.0
    %v490 = vrcp.pop %v484
    %v491 = vrcp.pop %v485
    %v492 = vrcp.pop %v486
    %v493 = vrcp.pop %v487
    %v494 = vrcp.pop %v488
    %v495 = vrcp.pop %v489
    %v496 = vmul.f32 %v438, %v490
    %v497 = vmul.f32 %v443, %v491
    %v498 = vmul.f32 %v448, %v492
    %v499 = vmul.f32 %v453, %v493
    %v500 = vmul.f32 %v458, %v494
    %v501 = vmul.f32 %v463, %v495
    %v502 = vld [vmem:[%s7] sm:$0xff]
    %v503 = vld [vmem:[%s7 + $0x8] sm:$0xff]
    %v504 = vld [vmem:[%s7 + $0x10] sm:$0xff]
    %v505 = vld [vmem:[%s7 + $0x18] sm:$0xff]
    %v506 = vld [vmem:[%s7 + $0x20] sm:$0xff]
    %v507 = vld [vmem:[%s7 + $0x28] sm:$0xff]
    %v508 = vld [vmem:[%s8] sm:$0xff]
    %v509 = vld [vmem:[%s8 + $0x8] sm:$0xff]
    %v510 = vld [vmem:[%s8 + $0x10] sm:$0xff]
    %v511 = vld [vmem:[%s8 + $0x18] sm:$0xff]
    %v512 = vld [vmem:[%s8 + $0x20] sm:$0xff]
    %v513 = vld [vmem:[%s8 + $0x28] sm:$0xff]
    %515 = vset.pattern.permute.xlu0 0
    %516 = vperm.xlu0 %515, %v508
    %v517 = vpop.permute.xlu0 %516
    %520 = vset.pattern.permute.xlu0 0
    %521 = vperm.xlu0 %520, %v509
    %v522 = vpop.permute.xlu0 %521
    %525 = vset.pattern.permute.xlu0 0
    %526 = vperm.xlu0 %525, %v510
    %v527 = vpop.permute.xlu0 %526
    %530 = vset.pattern.permute.xlu0 0
    %531 = vperm.xlu0 %530, %v511
    %v532 = vpop.permute.xlu0 %531
    %535 = vset.pattern.permute.xlu0 0
    %536 = vperm.xlu0 %535, %v512
    %v537 = vpop.permute.xlu0 %536
    %540 = vset.pattern.permute.xlu0 0
    %541 = vperm.xlu0 %540, %v513
    %v542 = vpop.permute.xlu0 %541
    %vm544 = vcmask 392192
    %v546 = vsel %vm544, %v502, 0
    %v549 = vsel %vm544, %v503, 0
    %v552 = vsel %vm544, %v504, 0
    %v555 = vsel %vm544, %v505, 0
    %v558 = vsel %vm544, %v506, 0
    %v561 = vsel %vm544, %v507, 0
    %563 = vmatprep.subr.mxu0 0.0
    %564 = vmatpush1.msra.mxu0 %v496
    %565 = vmatprep.subr.mxu0 0.0
    %566 = vmatpush1.msra.mxu0 %v497
    %567 = vmatprep.subr.mxu0 0.0
    %568 = vmatpush1.msra.mxu0 %v498
    %569 = vmatprep.subr.mxu0 0.0
    %570 = vmatpush1.msra.mxu0 %v499
    %571 = vmatprep.subr.mxu0 0.0
    %572 = vmatpush1.msra.mxu0 %v500
    %573 = vmatprep.subr.mxu0 0.0
    %574 = vmatpush1.msra.mxu0 %v501
    %575 = vmatprep.subr.mxu0 0.0
    %576 = vmatpush1.msra.mxu0 0.0
    %577 = vmatprep.subr.mxu0 0.0
    %578 = vmatpush1.msra.mxu0 0.0
    %579 = vmatprep.subr.mxu0 0.0
    %580 = vmatpush1.msra.mxu0 0.0
    %581 = vmatprep.subr.mxu0 0.0
    %582 = vmatpush1.msra.mxu0 0.0
    %583 = vmatprep.subr.mxu0 0.0
    %584 = vmatpush1.msra.mxu0 0.0
    %585 = vmatprep.subr.mxu0 0.0
    %586 = vmatpush1.msra.mxu0 0.0
    %587 = vmatprep.subr.mxu0 0.0
    %588 = vmatpush1.msra.mxu0 0.0
    %589 = vmatprep.subr.mxu0 0.0
    %590 = vmatpush1.msra.mxu0 0.0
    %591 = vmatprep.subr.mxu0 0.0
    %592 = vmatpush1.msra.mxu0 0.0
    %593 = vmatprep.subr.mxu0 0.0
    %594 = vmatpush1.msra.mxu0 0.0
    %595 = vmatprep.subr.mxu0 0.0
    %596 = vmatpush1.msra.mxu0 0.0
    %597 = vmatprep.subr.mxu0 0.0
    %598 = vmatpush1.msra.mxu0 0.0
    %599 = vmatprep.subr.mxu0 0.0
    %600 = vmatpush1.msra.mxu0 0.0
    %601 = vmatprep.subr.mxu0 0.0
    %602 = vmatpush1.msra.mxu0 0.0
    %603 = vmatprep.subr.mxu0 0.0
    %604 = vmatpush1.msra.mxu0 0.0
    %605 = vmatprep.subr.mxu0 0.0
    %606 = vmatpush1.msra.mxu0 0.0
    %607 = vmatprep.subr.mxu0 0.0
    %608 = vmatpush1.msra.mxu0 0.0
    %609 = vmatprep.subr.mxu0 0.0
    %610 = vmatpush1.msra.mxu0 0.0
    %611 = vmatprep.subr.mxu0 0.0
    %612 = vmatpush1.msra.mxu0 0.0
    %613 = vmatprep.subr.mxu0 0.0
    %614 = vmatpush1.msra.mxu0 0.0
    %615 = vmatprep.subr.mxu0 0.0
    %616 = vmatpush1.msra.mxu0 0.0
    %617 = vmatprep.subr.mxu0 0.0
    %618 = vmatpush1.msra.mxu0 0.0
    %619 = vmatprep.subr.mxu0 0.0
    %620 = vmatpush1.msra.mxu0 0.0
    %621 = vmatprep.subr.mxu0 0.0
    %622 = vmatpush1.msra.mxu0 0.0
    %623 = vmatprep.subr.mxu0 0.0
    %624 = vmatpush1.msra.mxu0 0.0
    %625 = vmatprep.subr.mxu0 0.0
    %626 = vmatpush1.msra.mxu0 0.0
    %627 = vmatprep.mubr.f32.mxu0 0.0
    %628 = vmatmul.mubr.f32.gmra.mrb[0].mxu0 %v546
    %v629 = vpop.f32.mrb[0].mxu0
    %v630 = vadd.f32 %v517, %v629
    %v631 = vpop.f32.mrb[0].mxu0
    %632 = vmatprep.mubr.f32.mxu0 0.0
    %633 = vmatmul.mubr.f32.gmra.mrb[0].mxu0 %v549
    %v634 = vpop.f32.mrb[0].mxu0
    %v635 = vadd.f32 %v522, %v634
    %v636 = vpop.f32.mrb[0].mxu0
    %637 = vmatprep.mubr.f32.mxu0 0.0
    %638 = vmatmul.mubr.f32.gmra.mrb[0].mxu0 %v552
    %v639 = vpop.f32.mrb[0].mxu0
    %v640 = vadd.f32 %v527, %v639
    %v641 = vpop.f32.mrb[0].mxu0
    %642 = vmatprep.mubr.f32.mxu0 0.0
    %643 = vmatmul.mubr.f32.gmra.mrb[0].mxu0 %v555
    %v644 = vpop.f32.mrb[0].mxu0
    %v645 = vadd.f32 %v532, %v644
    %v646 = vpop.f32.mrb[0].mxu0
    %647 = vmatprep.mubr.f32.mxu0 0.0
    %648 = vmatmul.mubr.f32.gmra.mrb[0].mxu0 %v558
    %v649 = vpop.f32.mrb[0].mxu0
    %v650 = vadd.f32 %v537, %v649
    %v651 = vpop.f32.mrb[0].mxu0
    %652 = vmatprep.mubr.f32.mxu0 0.0
    %653 = vmatmul.mubr.f32.gmra.mrb[0].mxu0 %v561
    %v654 = vpop.f32.mrb[0].mxu0
    %v655 = vadd.f32 %v542, %v654
    %v656 = vpop.f32.mrb[0].mxu0
    %657 = vdwg.mxu0
    %v658 = vsub.f32 0.0, %v630
    %v659 = vsub.f32 0.0, %v635
    %v660 = vsub.f32 0.0, %v640
    %v661 = vsub.f32 0.0, %v645
    %v662 = vsub.f32 0.0, %v650
    %v663 = vsub.f32 0.0, %v655
    %v664 = vmul.f32 %v658, 1.442695
    %v665 = vpow.pop %v664
    %v666 = vmul.f32 %v659, 1.442695
    %v667 = vpow.pop %v666
    %v668 = vmul.f32 %v660, 1.442695
    %v669 = vpow.pop %v668
    %v670 = vmul.f32 %v661, 1.442695
    %v671 = vpow.pop %v670
    %v672 = vmul.f32 %v662, 1.442695
    %v673 = vpow.pop %v672
    %v674 = vmul.f32 %v663, 1.442695
    %v675 = vpow.pop %v674
    %v676 = vadd.f32 %v665, 1.0
    %v677 = vadd.f32 %v667, 1.0
    %v678 = vadd.f32 %v669, 1.0
    %v679 = vadd.f32 %v671, 1.0
    %v680 = vadd.f32 %v673, 1.0
    %v681 = vadd.f32 %v675, 1.0
    %v682 = vrcp.pop %v676
    %v683 = vrcp.pop %v677
    %v684 = vrcp.pop %v678
    %v685 = vrcp.pop %v679
    %v686 = vrcp.pop %v680
    %v687 = vrcp.pop %v681
    %v688 = vmul.f32 %v630, %v682
    %v689 = vmul.f32 %v635, %v683
    %v690 = vmul.f32 %v640, %v684
    %v691 = vmul.f32 %v645, %v685
    %v692 = vmul.f32 %v650, %v686
    %v693 = vmul.f32 %v655, %v687
    %v694 = vld [vmem:[%s9] sm:$0xff]
    %v695 = vld [vmem:[%s9 + $0x8] sm:$0xff]
    %v696 = vld [vmem:[%s9 + $0x10] sm:$0xff]
    %v697 = vld [vmem:[%s10] sm:$0xff]
    %v698 = vld [vmem:[%s10 + $0x8] sm:$0xff]
    %v699 = vld [vmem:[%s10 + $0x10] sm:$0xff]
    %701 = vset.pattern.permute.xlu0 0
    %702 = vperm.xlu0 %701, %v697
    %v703 = vpop.permute.xlu0 %702
    %706 = vset.pattern.permute.xlu0 0
    %707 = vperm.xlu0 %706, %v698
    %v708 = vpop.permute.xlu0 %707
    %711 = vset.pattern.permute.xlu0 0
    %712 = vperm.xlu0 %711, %v699
    %v713 = vpop.permute.xlu0 %712
    %v716 = vsel %vm544, %v694, 0
    %v719 = vsel %vm544, %v695, 0
    %v722 = vsel %vm544, %v696, 0
    %724 = vmatprep.subr.mxu0 0.0
    %725 = vmatpush1.msra.mxu0 %v688
    %726 = vmatprep.subr.mxu0 0.0
    %727 = vmatpush1.msra.mxu0 %v689
    %728 = vmatprep.subr.mxu0 0.0
    %729 = vmatpush1.msra.mxu0 %v690
    %730 = vmatprep.subr.mxu0 0.0
    %731 = vmatpush1.msra.mxu0 %v691
    %732 = vmatprep.subr.mxu0 0.0
    %733 = vmatpush1.msra.mxu0 %v692
    %734 = vmatprep.subr.mxu0 0.0
    %735 = vmatpush1.msra.mxu0 %v693
    %736 = vmatprep.subr.mxu0 0.0
    %737 = vmatpush1.msra.mxu0 0.0
    %738 = vmatprep.subr.mxu0 0.0
    %739 = vmatpush1.msra.mxu0 0.0
    %740 = vmatprep.subr.mxu0 0.0
    %741 = vmatpush1.msra.mxu0 0.0
    %742 = vmatprep.subr.mxu0 0.0
    %743 = vmatpush1.msra.mxu0 0.0
    %744 = vmatprep.subr.mxu0 0.0
    %745 = vmatpush1.msra.mxu0 0.0
    %746 = vmatprep.subr.mxu0 0.0
    %747 = vmatpush1.msra.mxu0 0.0
    %748 = vmatprep.subr.mxu0 0.0
    %749 = vmatpush1.msra.mxu0 0.0
    %750 = vmatprep.subr.mxu0 0.0
    %751 = vmatpush1.msra.mxu0 0.0
    %752 = vmatprep.subr.mxu0 0.0
    %753 = vmatpush1.msra.mxu0 0.0
    %754 = vmatprep.subr.mxu0 0.0
    %755 = vmatpush1.msra.mxu0 0.0
    %756 = vmatprep.subr.mxu0 0.0
    %757 = vmatpush1.msra.mxu0 0.0
    %758 = vmatprep.subr.mxu0 0.0
    %759 = vmatpush1.msra.mxu0 0.0
    %760 = vmatprep.subr.mxu0 0.0
    %761 = vmatpush1.msra.mxu0 0.0
    %762 = vmatprep.subr.mxu0 0.0
    %763 = vmatpush1.msra.mxu0 0.0
    %764 = vmatprep.subr.mxu0 0.0
    %765 = vmatpush1.msra.mxu0 0.0
    %766 = vmatprep.subr.mxu0 0.0
    %767 = vmatpush1.msra.mxu0 0.0
    %768 = vmatprep.subr.mxu0 0.0
    %769 = vmatpush1.msra.mxu0 0.0
    %770 = vmatprep.subr.mxu0 0.0
    %771 = vmatpush1.msra.mxu0 0.0
    %772 = vmatprep.subr.mxu0 0.0
    %773 = vmatpush1.msra.mxu0 0.0
    %774 = vmatprep.subr.mxu0 0.0
    %775 = vmatpush1.msra.mxu0 0.0
    %776 = vmatprep.subr.mxu0 0.0
    %777 = vmatpush1.msra.mxu0 0.0
    %778 = vmatprep.subr.mxu0 0.0
    %779 = vmatpush1.msra.mxu0 0.0
    %780 = vmatprep.subr.mxu0 0.0
    %781 = vmatpush1.msra.mxu0 0.0
    %782 = vmatprep.subr.mxu0 0.0
    %783 = vmatpush1.msra.mxu0 0.0
    %784 = vmatprep.subr.mxu0 0.0
    %785 = vmatpush1.msra.mxu0 0.0
    %786 = vmatprep.subr.mxu0 0.0
    %787 = vmatpush1.msra.mxu0 0.0
    %788 = vmatprep.mubr.f32.mxu0 0.0
    %789 = vmatmul.mubr.f32.gmra.mrb[0].mxu0 %v716
    %v790 = vpop.f32.mrb[0].mxu0
    %v791 = vadd.f32 %v703, %v790
    %v792 = vpop.f32.mrb[0].mxu0
    %793 = vmatprep.mubr.f32.mxu0 0.0
    %794 = vmatmul.mubr.f32.gmra.mrb[0].mxu0 %v719
    %v795 = vpop.f32.mrb[0].mxu0
    %v796 = vadd.f32 %v708, %v795
    %v797 = vpop.f32.mrb[0].mxu0
    %798 = vmatprep.mubr.f32.mxu0 0.0
    %799 = vmatmul.mubr.f32.gmra.mrb[0].mxu0 %v722
    %v800 = vpop.f32.mrb[0].mxu0
    %v801 = vadd.f32 %v713, %v800
    %v802 = vpop.f32.mrb[0].mxu0
    %803 = vdwg.mxu0
    %v804 = vsub.f32 0.0, %v791
    %v805 = vsub.f32 0.0, %v796
    %v806 = vsub.f32 0.0, %v801
    %v807 = vmul.f32 %v804, 1.442695
    %v808 = vpow.pop %v807
    %v809 = vmul.f32 %v805, 1.442695
    %v810 = vpow.pop %v809
    %v811 = vmul.f32 %v806, 1.442695
    %v812 = vpow.pop %v811
    %v813 = vadd.f32 %v808, 1.0
    %v814 = vadd.f32 %v810, 1.0
    %v815 = vadd.f32 %v812, 1.0
    %v816 = vrcp.pop %v813
    %v817 = vrcp.pop %v814
    %v818 = vrcp.pop %v815
    %v819 = vmul.f32 %v791, %v816
    %v820 = vmul.f32 %v796, %v817
    %v821 = vmul.f32 %v801, %v818
    %v822 = vld [vmem:[%s11] sm:$0xff]
    %v823 = vld [vmem:[%s11 + $0x8] sm:$0xff]
    %v824 = vld [vmem:[%s12] sm:$0xff]
    %v825 = vld [vmem:[%s12 + $0x8] sm:$0xff]
    %827 = vset.pattern.permute.xlu0 0
    %828 = vperm.xlu0 %827, %v824
    %v829 = vpop.permute.xlu0 %828
    %832 = vset.pattern.permute.xlu0 0
    %833 = vperm.xlu0 %832, %v825
    %v834 = vpop.permute.xlu0 %833
    %vm836 = vcmask 195584
    %v838 = vsel %vm836, %v822, 0
    %v841 = vsel %vm836, %v823, 0
    %843 = vmatprep.subr.mxu0 0.0
    %844 = vmatpush1.msra.mxu0 %v819
    %845 = vmatprep.subr.mxu0 0.0
    %846 = vmatpush1.msra.mxu0 %v820
    %847 = vmatprep.subr.mxu0 0.0
    %848 = vmatpush1.msra.mxu0 %v821
    %849 = vmatprep.subr.mxu0 0.0
    %850 = vmatpush1.msra.mxu0 0.0
    %851 = vmatprep.subr.mxu0 0.0
    %852 = vmatpush1.msra.mxu0 0.0
    %853 = vmatprep.subr.mxu0 0.0
    %854 = vmatpush1.msra.mxu0 0.0
    %855 = vmatprep.subr.mxu0 0.0
    %856 = vmatpush1.msra.mxu0 0.0
    %857 = vmatprep.subr.mxu0 0.0
    %858 = vmatpush1.msra.mxu0 0.0
    %859 = vmatprep.subr.mxu0 0.0
    %860 = vmatpush1.msra.mxu0 0.0
    %861 = vmatprep.subr.mxu0 0.0
    %862 = vmatpush1.msra.mxu0 0.0
    %863 = vmatprep.subr.mxu0 0.0
    %864 = vmatpush1.msra.mxu0 0.0
    %865 = vmatprep.subr.mxu0 0.0
    %866 = vmatpush1.msra.mxu0 0.0
    %867 = vmatprep.subr.mxu0 0.0
    %868 = vmatpush1.msra.mxu0 0.0
    %869 = vmatprep.subr.mxu0 0.0
    %870 = vmatpush1.msra.mxu0 0.0
    %871 = vmatprep.subr.mxu0 0.0
    %872 = vmatpush1.msra.mxu0 0.0
    %873 = vmatprep.subr.mxu0 0.0
    %874 = vmatpush1.msra.mxu0 0.0
    %875 = vmatprep.subr.mxu0 0.0
    %876 = vmatpush1.msra.mxu0 0.0
    %877 = vmatprep.subr.mxu0 0.0
    %878 = vmatpush1.msra.mxu0 0.0
    %879 = vmatprep.subr.mxu0 0.0
    %880 = vmatpush1.msra.mxu0 0.0
    %881 = vmatprep.subr.mxu0 0.0
    %882 = vmatpush1.msra.mxu0 0.0
    %883 = vmatprep.subr.mxu0 0.0
    %884 = vmatpush1.msra.mxu0 0.0
    %885 = vmatprep.subr.mxu0 0.0
    %886 = vmatpush1.msra.mxu0 0.0
    %887 = vmatprep.subr.mxu0 0.0
    %888 = vmatpush1.msra.mxu0 0.0
    %889 = vmatprep.subr.mxu0 0.0
    %890 = vmatpush1.msra.mxu0 0.0
    %891 = vmatprep.subr.mxu0 0.0
    %892 = vmatpush1.msra.mxu0 0.0
    %893 = vmatprep.subr.mxu0 0.0
    %894 = vmatpush1.msra.mxu0 0.0
    %895 = vmatprep.subr.mxu0 0.0
    %896 = vmatpush1.msra.mxu0 0.0
    %897 = vmatprep.subr.mxu0 0.0
    %898 = vmatpush1.msra.mxu0 0.0
    %899 = vmatprep.subr.mxu0 0.0
    %900 = vmatpush1.msra.mxu0 0.0
    %901 = vmatprep.subr.mxu0 0.0
    %902 = vmatpush1.msra.mxu0 0.0
    %903 = vmatprep.subr.mxu0 0.0
    %904 = vmatpush1.msra.mxu0 0.0
    %905 = vmatprep.subr.mxu0 0.0
    %906 = vmatpush1.msra.mxu0 0.0
    %907 = vmatprep.mubr.f32.mxu0 0.0
    %908 = vmatmul.mubr.f32.gmra.mrb[0].mxu0 %v838
    %v909 = vpop.f32.mrb[0].mxu0
    %v910 = vadd.f32 %v829, %v909
    %v911 = vpop.f32.mrb[0].mxu0
    %912 = vmatprep.mubr.f32.mxu0 0.0
    %913 = vmatmul.mubr.f32.gmra.mrb[0].mxu0 %v841
    %v914 = vpop.f32.mrb[0].mxu0
    %v915 = vadd.f32 %v834, %v914
    %v916 = vpop.f32.mrb[0].mxu0
    %917 = vdwg.mxu0
    %v918 = vsub.f32 0.0, %v910
    %v919 = vsub.f32 0.0, %v915
    %v920 = vmul.f32 %v918, 1.442695
    %v921 = vpow.pop %v920
    %v922 = vmul.f32 %v919, 1.442695
    %v923 = vpow.pop %v922
    %v924 = vadd.f32 %v921, 1.0
    %v925 = vadd.f32 %v923, 1.0
    %v926 = vrcp.pop %v924
    %v927 = vrcp.pop %v925
    %v928 = vmul.f32 %v910, %v926
    %v929 = vmul.f32 %v915, %v927
    %v930 = vld [vmem:[%s13] sm:$0xff]
    %v931 = vld [vmem:[%s14] sm:$0xff]
    %933 = vset.pattern.permute.xlu0 0
    %934 = vperm.xlu0 %933, %v931
    %v935 = vpop.permute.xlu0 %934
    %v938 = vsel %vm188, %v930, 0
    %940 = vmatprep.subr.mxu0 0.0
    %941 = vmatpush1.msra.mxu0 %v928
    %942 = vmatprep.subr.mxu0 0.0
    %943 = vmatpush1.msra.mxu0 %v929
    %944 = vmatprep.subr.mxu0 0.0
    %945 = vmatpush1.msra.mxu0 0.0
    %946 = vmatprep.subr.mxu0 0.0
    %947 = vmatpush1.msra.mxu0 0.0
    %948 = vmatprep.subr.mxu0 0.0
    %949 = vmatpush1.msra.mxu0 0.0
    %950 = vmatprep.subr.mxu0 0.0
    %951 = vmatpush1.msra.mxu0 0.0
    %952 = vmatprep.subr.mxu0 0.0
    %953 = vmatpush1.msra.mxu0 0.0
    %954 = vmatprep.subr.mxu0 0.0
    %955 = vmatpush1.msra.mxu0 0.0
    %956 = vmatprep.subr.mxu0 0.0
    %957 = vmatpush1.msra.mxu0 0.0
    %958 = vmatprep.subr.mxu0 0.0
    %959 = vmatpush1.msra.mxu0 0.0
    %960 = vmatprep.subr.mxu0 0.0
    %961 = vmatpush1.msra.mxu0 0.0
    %962 = vmatprep.subr.mxu0 0.0
    %963 = vmatpush1.msra.mxu0 0.0
    %964 = vmatprep.subr.mxu0 0.0
    %965 = vmatpush1.msra.mxu0 0.0
    %966 = vmatprep.subr.mxu0 0.0
    %967 = vmatpush1.msra.mxu0 0.0
    %968 = vmatprep.subr.mxu0 0.0
    %969 = vmatpush1.msra.mxu0 0.0
    %970 = vmatprep.subr.mxu0 0.0
    %971 = vmatpush1.msra.mxu0 0.0
    %972 = vmatprep.subr.mxu0 0.0
    %973 = vmatpush1.msra.mxu0 0.0
    %974 = vmatprep.subr.mxu0 0.0
    %975 = vmatpush1.msra.mxu0 0.0
    %976 = vmatprep.subr.mxu0 0.0
    %977 = vmatpush1.msra.mxu0 0.0
    %978 = vmatprep.subr.mxu0 0.0
    %979 = vmatpush1.msra.mxu0 0.0
    %980 = vmatprep.subr.mxu0 0.0
    %981 = vmatpush1.msra.mxu0 0.0
    %982 = vmatprep.subr.mxu0 0.0
    %983 = vmatpush1.msra.mxu0 0.0
    %984 = vmatprep.subr.mxu0 0.0
    %985 = vmatpush1.msra.mxu0 0.0
    %986 = vmatprep.subr.mxu0 0.0
    %987 = vmatpush1.msra.mxu0 0.0
    %988 = vmatprep.subr.mxu0 0.0
    %989 = vmatpush1.msra.mxu0 0.0
    %990 = vmatprep.subr.mxu0 0.0
    %991 = vmatpush1.msra.mxu0 0.0
    %992 = vmatprep.subr.mxu0 0.0
    %993 = vmatpush1.msra.mxu0 0.0
    %994 = vmatprep.subr.mxu0 0.0
    %995 = vmatpush1.msra.mxu0 0.0
    %996 = vmatprep.subr.mxu0 0.0
    %997 = vmatpush1.msra.mxu0 0.0
    %998 = vmatprep.subr.mxu0 0.0
    %999 = vmatpush1.msra.mxu0 0.0
    %1000 = vmatprep.subr.mxu0 0.0
    %1001 = vmatpush1.msra.mxu0 0.0
    %1002 = vmatprep.subr.mxu0 0.0
    %1003 = vmatpush1.msra.mxu0 0.0
    %1004 = vmatprep.mubr.f32.mxu0 0.0
    %1005 = vmatmul.mubr.f32.gmra.mrb[0].mxu0 %v938
    %v1006 = vpop.f32.mrb[0].mxu0
    %v1007 = vadd.f32 %v935, %v1006
    %v1008 = vpop.f32.mrb[0].mxu0
    %1009 = vdwg.mxu0
    %1010 = vst [vmem:[#allocation2] sm:$0xff] %v1007
    // Predicated region
    $region62: #{tpu_custom_call.1} parent=1 // pred_check
      _
    $region63: #{tpu_custom_call.1} parent=1 // pred_check_branch
      %1012 = sbr.rel (0) target = $region65
    $region64: #{tpu_custom_call.1} parent=1 // pred_region
      %s1014 = ssub.s32 128, 128
      %1015 = vsyncadd [#allocation3], %s1014
      %s1017 = sshll.u32 [#allocation2], 4
      %s1018 = int_to_ptr.vmem [resolvable:$true] %s1017
      %1020 = dma.vmem_to_hbm [thread:$0]  %s1018, 128, %s15, [#allocation3]
    $region65: #{tpu_custom_call.1} parent=1 // pred_fallthru
      _
    // Predicated region
    $region66: #{tpu_custom_call.1} parent=1 // pred_check
      _
    $region67: #{tpu_custom_call.1} parent=1 // pred_check_branch
      %1022 = sbr.rel (0) target = $region69
    $region68: #{tpu_custom_call.1} parent=1 // pred_region
      %1023 = dma.done [#allocation3], 128
    $region69: #{tpu_custom_call.1} parent=1 // pred_fallthru
      _
    %1024 = vsyncpa [#allocation3], 1

</llo_original>
